<compile_context>
chip_gen: v5e
topology: v5e:2x2
jax: 0.10.0
libtpu: 0.0.40
codegen_flags: <defaults>
</compile_context>

<pallas_src>
import math

import jax
import jax.numpy as jnp
import numpy as np
from jax.experimental import pallas as pl
from jax.experimental.pallas import tpu as pltpu


def _make_degree_operator(m: int, l_pad: int) -> np.ndarray:
    """Dense degree operator, zero-padded to l_pad columns.

    Column e (edge (i,j), row-major upper-triangular order) has ones at rows i and j,
    so (w @ D.T)[:, n] = sum of edge weights incident to node n.  Padded columns are
    exactly zero, so padded edge lanes never contaminate the valid region.
    """
    l = m * (m - 1) // 2
    iu, ju = np.triu_indices(m, k=1)          # edge order (0,1),(0,2),...,(m-2,m-1)
    cols = np.arange(l)
    D = np.zeros((m, l_pad), dtype=np.float32)
    D[iu, cols] = 1.0
    D[ju, cols] = 1.0
    return D


def _unroll_kernel(gn_ref, a_ref, ga4_ref,        # SMEM scalar-prefetch, shape (layers,)
                   z_ref, d_ref, dt_ref,          # VMEM: (Bt, Lp), (m, Lp), (Lp, m)
                   out_ref):                      # VMEM output block: (Bt, layers*Lp)
    layers = gn_ref.shape[0]

    # Layer-invariant vector work, hoisted out of the unrolled loop.
    z2 = 2.0 * z_ref[...]                          # (Bt, Lp)
    D = d_ref[...]                                 # (m, Lp)
    Dt = dt_ref[...]                               # (Lp, m)

    Bt, Lp = z2.shape
    m = D.shape[0]

    w = jnp.zeros((Bt, Lp), jnp.float32)
    v = jnp.zeros((Bt, m), jnp.float32)

    # `layers` is a small static int -> full static unroll; every output store index
    # is a static, 128-aligned lane slice (unmasked full-vreg vst).
    for i in range(layers):
        gn = gn_ref[i]
        a = a_ref[i]        # 1 - 2*gn*beta   (folds  w - gn*2*beta*w  ->  a*w)
        ga4 = ga4_ref[i]    # 4*gn*alpha

        vD = jnp.dot(v, D, preferred_element_type=jnp.float32)     # (Bt, Lp)
        wDt = jnp.dot(w, Dt, preferred_element_type=jnp.float32)   # (Bt, m)

        # y1 = w - gn*(2*beta*w + 2*z + v @ D);  y2 = v + gn*(w @ D.T)
        y1 = a * w - gn * (z2 + vD)
        y2 = v + gn * wDt

        # p1 = max(0, y1);  p2 = prox_log_barrier(y2, gn, alpha)
        p1 = jnp.maximum(y1, 0.0)
        up = jnp.maximum(y2 * y2 + ga4, 1e-8)
        p2 = 0.5 * (y2 - jnp.sqrt(up))

        p2D = jnp.dot(p2, D, preferred_element_type=jnp.float32)    # (Bt, Lp)
        p1Dt = jnp.dot(p1, Dt, preferred_element_type=jnp.float32)  # (Bt, m)

        # Algebraically identical to  w - y1 + q1  /  v - y2 + q2  (gn*z2 cancels):
        #   q1 = a*p1 - gn*(z2 + p2D);  q2 = p2 + gn*p1Dt
        w = w + a * (p1 - w) + gn * (vD - p2D)
        v = p2 + gn * (p1Dt - wDt)

        # Lane-dense store of layer i into the flattened (Bt, layers*Lp) output.
        out_ref[:, i * Lp:(i + 1) * Lp] = w


def unrolling_forward(z: jax.Array, gn: jax.Array, beta: jax.Array, alpha: jax.Array):
    """Pallas forward pass. z: (B, L). Returns w_list: (B, layers, L) float32."""
    z = jnp.asarray(z, jnp.float32)
    B, L = z.shape
    # Integer-exact inversion of L = m*(m-1)/2 (round, then verify).
    m = int(round((1.0 + math.sqrt(1.0 + 8.0 * L)) / 2.0))
    assert m * (m - 1) // 2 == L, "L must equal m*(m-1)/2 for an integer m"
    layers = int(gn.shape[0])

    # Pad edge dim to lane-dense width; pad batch to sublane-dense tiles.
    Lp = max(128, ((L + 127) // 128) * 128)
    MAX_TILE_B = 512           # keeps blocks small on v5e's 16 MiB scoped VMEM
    if B <= MAX_TILE_B:
        Bp = max(8, ((B + 7) // 8) * 8)
        tile_b = Bp
    else:
        Bp = ((B + MAX_TILE_B - 1) // MAX_TILE_B) * MAX_TILE_B
        tile_b = MAX_TILE_B

    D_np = _make_degree_operator(m, Lp)                 # (m, Lp), padded cols are zero
    D = jnp.asarray(D_np)
    Dt = jnp.asarray(np.ascontiguousarray(D_np.T))      # (Lp, m)

    z_p = jnp.zeros((Bp, Lp), jnp.float32).at[:B, :L].set(z)

    # Per-layer scalars precomputed once in the wrapper (no redundant sreg math /
    # broadcast splats inside the unrolled kernel body).
    gn_f = jnp.reshape(gn, (layers,)).astype(jnp.float32)
    beta_f = jnp.reshape(beta, (layers,)).astype(jnp.float32)
    alpha_f = jnp.reshape(alpha, (layers,)).astype(jnp.float32)
    a_f = 1.0 - 2.0 * gn_f * beta_f
    ga4_f = 4.0 * gn_f * alpha_f

    grid_spec = pltpu.PrefetchScalarGridSpec(
        num_scalar_prefetch=3,                       # gn, a, ga4 -> SMEM
        grid=(Bp // tile_b,),
        in_specs=[
            pl.BlockSpec((tile_b, Lp), lambda b, gn, a, ga4: (b, 0)),   # z
            pl.BlockSpec((m, Lp), lambda b, gn, a, ga4: (0, 0)),        # D  (resident)
            pl.BlockSpec((Lp, m), lambda b, gn, a, ga4: (0, 0)),        # Dt (resident)
        ],
        out_specs=pl.BlockSpec((tile_b, layers * Lp), lambda b, gn, a, ga4: (b, 0)),
    )

    out = pl.pallas_call(
        _unroll_kernel,
        out_shape=jax.ShapeDtypeStruct((Bp, layers * Lp), jnp.float32),
        grid_spec=grid_spec,
        compiler_params=pltpu.CompilerParams(dimension_semantics=("parallel",)),
    )(gn_f, a_f, ga4_f, z_p, D, Dt)

    # Free row-major reshape, then strip padding -> PyTorch (B, layers, L) convention.
    out = out.reshape(Bp, layers, Lp)
    return out[:B, :, :L]


def unrolling_reference(z, gn, beta, alpha):
    """Pure-JAX reference mirroring the PyTorch forward, for verification."""
    z = z.astype(jnp.float32)
    B, L = z.shape
    m = int(round((1.0 + math.sqrt(1.0 + 8.0 * L)) / 2.0))
    layers = gn.shape[0]
    D = jnp.asarray(_make_degree_operator(m, L))
    w = jnp.zeros((B, L), jnp.float32)
    v = jnp.zeros((B, m), jnp.float32)
    outs = []
    for i in range(layers):
        g, b, a = gn[i, 0], beta[i, 0], alpha[i, 0]
        y1 = w - g * (2 * b * w + 2 * z + v @ D)
        y2 = v + g * (w @ D.T)
        p1 = jnp.maximum(y1, 0.0)
        up = jnp.maximum(y2 ** 2 + 4 * g * a, 1e-8)
        p2 = (y2 - jnp.sqrt(up)) / 2
        q1 = p1 - g * (2 * b * p1 + 2 * z + p2 @ D)
        q2 = p2 + g * (p1 @ D.T)
        w = w - y1 + q1
        v = v - y2 + q2
        outs.append(w)
    return jnp.stack(outs, axis=1)


if __name__ == "__main__":
    # Small shapes: m = 8 graph nodes -> L = 28 edge weights, batch = 2, 4 unrolled layers.
    num_unroll = 4
    m = 8
    L = m * (m - 1) // 2
    B = 2

    # Deterministic parameter init matching the module's __init__.
    gn = jnp.ones((num_unroll, 1), jnp.float32) / 100.0
    beta = jnp.ones((num_unroll, 1), jnp.float32)
    alpha = jnp.ones((num_unroll, 1), jnp.float32)

    key = jax.random.PRNGKey(0)
    z = jax.random.normal(key, (B, L), dtype=jnp.float32)

    w_list = jax.block_until_ready(unrolling_forward(z, gn, beta, alpha))
    ref = unrolling_reference(z, gn, beta, alpha)

    assert w_list.shape == (B, num_unroll, L), w_list.shape
    np.testing.assert_allclose(np.asarray(w_list), np.asarray(ref), rtol=1e-5, atol=1e-5)
    print("KERNEL_OK")
</pallas_src>

<mosaic_0001>
module attributes {stable_mosaic.version = 11 : i64} {
  func.func @_unroll_kernel(%arg0: i32, %arg1: memref<4xf32, #tpu.memory_space<smem>>, %arg2: memref<4xf32, #tpu.memory_space<smem>>, %arg3: memref<4xf32, #tpu.memory_space<smem>>, %arg4: memref<8x128xf32, #tpu.memory_space<vmem>>, %arg5: memref<8x128xf32, #tpu.memory_space<vmem>>, %arg6: memref<128x8xf32, #tpu.memory_space<vmem>>, %arg7: memref<8x512xf32, #tpu.memory_space<vmem>>) attributes {dimension_semantics = [#tpu.dimension_semantics<parallel>], iteration_bounds = array<i64: 1>, scalar_prefetch = 3 : i64, scratch_operands = 0 : i64, tpu.core_type = #tpu.core_type<tc>, window_params = [{transform_indices = @transform_0, window_bounds = array<i64: 8, 128>}, {pipeline_mode = #tpu.pipeline_mode<synchronous>, transform_indices = @transform_1, window_bounds = array<i64: 8, 128>}, {pipeline_mode = #tpu.pipeline_mode<synchronous>, transform_indices = @transform_2, window_bounds = array<i64: 128, 8>}, {transform_indices = @transform_3, window_bounds = array<i64: 8, 512>}]} {
    %c0 = arith.constant 0 : index
    %c0_0 = arith.constant 0 : index
    %0 = vector.load %arg4[%c0, %c0_0] : memref<8x128xf32, #tpu.memory_space<vmem>>, vector<8x128xf32>
    %cst = arith.constant 2.000000e+00 : f32
    %1 = vector.broadcast %cst : f32 to vector<8x128xf32>
    %2 = arith.mulf %1, %0 : vector<8x128xf32>
    %c0_1 = arith.constant 0 : index
    %c0_2 = arith.constant 0 : index
    %3 = vector.load %arg5[%c0_1, %c0_2] : memref<8x128xf32, #tpu.memory_space<vmem>>, vector<8x128xf32>
    %c0_3 = arith.constant 0 : index
    %c0_4 = arith.constant 0 : index
    %4 = vector.load %arg6[%c0_3, %c0_4] : memref<128x8xf32, #tpu.memory_space<vmem>>, vector<128x8xf32>
    %cst_5 = arith.constant 0.000000e+00 : f32
    %5 = vector.broadcast %cst_5 : f32 to vector<8x128xf32>
    %cst_6 = arith.constant 0.000000e+00 : f32
    %6 = vector.broadcast %cst_6 : f32 to vector<8x8xf32>
    %c0_7 = arith.constant 0 : index
    %7 = memref.load %arg1[%c0_7] : memref<4xf32, #tpu.memory_space<smem>>
    %c0_8 = arith.constant 0 : index
    %8 = memref.load %arg2[%c0_8] : memref<4xf32, #tpu.memory_space<smem>>
    %c0_9 = arith.constant 0 : index
    %9 = memref.load %arg3[%c0_9] : memref<4xf32, #tpu.memory_space<smem>>
    %cst_10 = arith.constant dense<0.000000e+00> : vector<8x128xf32>
    %10 = tpu.matmul %6, %3, %cst_10 {dimension_numbers = #tpu.dot_dimension_numbers<[1], [0], [0], [1], [0, 0, 1, 1], [], []>} : vector<8x8xf32>, vector<8x128xf32>, vector<8x128xf32> -> vector<8x128xf32>
    %cst_11 = arith.constant dense<0.000000e+00> : vector<8x8xf32>
    %11 = tpu.matmul %5, %4, %cst_11 {dimension_numbers = #tpu.dot_dimension_numbers<[1], [0], [0], [1], [0, 0, 1, 1], [], []>} : vector<8x128xf32>, vector<128x8xf32>, vector<8x8xf32> -> vector<8x8xf32>
    %12 = vector.broadcast %8 : f32 to vector<8x128xf32>
    %13 = arith.mulf %12, %5 : vector<8x128xf32>
    %14 = arith.addf %2, %10 : vector<8x128xf32>
    %15 = vector.broadcast %7 : f32 to vector<8x128xf32>
    %16 = arith.mulf %15, %14 : vector<8x128xf32>
    %17 = arith.subf %13, %16 : vector<8x128xf32>
    %18 = vector.broadcast %7 : f32 to vector<8x8xf32>
    %19 = arith.mulf %18, %11 : vector<8x8xf32>
    %20 = arith.addf %6, %19 : vector<8x8xf32>
    %cst_12 = arith.constant 0.000000e+00 : f32
    %21 = vector.broadcast %cst_12 : f32 to vector<8x128xf32>
    %22 = arith.maximumf %17, %21 : vector<8x128xf32>
    %23 = arith.mulf %20, %20 : vector<8x8xf32>
    %24 = vector.broadcast %9 : f32 to vector<8x8xf32>
    %25 = arith.addf %23, %24 : vector<8x8xf32>
    %cst_13 = arith.constant 9.99999993E-9 : f32
    %26 = vector.broadcast %cst_13 : f32 to vector<8x8xf32>
    %27 = arith.maximumf %25, %26 : vector<8x8xf32>
    %28 = math.sqrt %27 : vector<8x8xf32>
    %29 = arith.subf %20, %28 : vector<8x8xf32>
    %cst_14 = arith.constant 5.000000e-01 : f32
    %30 = vector.broadcast %cst_14 : f32 to vector<8x8xf32>
    %31 = arith.mulf %30, %29 : vector<8x8xf32>
    %cst_15 = arith.constant dense<0.000000e+00> : vector<8x128xf32>
    %32 = tpu.matmul %31, %3, %cst_15 {dimension_numbers = #tpu.dot_dimension_numbers<[1], [0], [0], [1], [0, 0, 1, 1], [], []>} : vector<8x8xf32>, vector<8x128xf32>, vector<8x128xf32> -> vector<8x128xf32>
    %cst_16 = arith.constant dense<0.000000e+00> : vector<8x8xf32>
    %33 = tpu.matmul %22, %4, %cst_16 {dimension_numbers = #tpu.dot_dimension_numbers<[1], [0], [0], [1], [0, 0, 1, 1], [], []>} : vector<8x128xf32>, vector<128x8xf32>, vector<8x8xf32> -> vector<8x8xf32>
    %34 = arith.subf %22, %5 : vector<8x128xf32>
    %35 = vector.broadcast %8 : f32 to vector<8x128xf32>
    %36 = arith.mulf %35, %34 : vector<8x128xf32>
    %37 = arith.addf %5, %36 : vector<8x128xf32>
    %38 = arith.subf %10, %32 : vector<8x128xf32>
    %39 = vector.broadcast %7 : f32 to vector<8x128xf32>
    %40 = arith.mulf %39, %38 : vector<8x128xf32>
    %41 = arith.addf %37, %40 : vector<8x128xf32>
    %42 = arith.subf %33, %11 : vector<8x8xf32>
    %43 = vector.broadcast %7 : f32 to vector<8x8xf32>
    %44 = arith.mulf %43, %42 : vector<8x8xf32>
    %45 = arith.addf %31, %44 : vector<8x8xf32>
    %c0_17 = arith.constant 0 : index
    %c0_18 = arith.constant 0 : index
    %46 = vector.load %arg7[%c0_17, %c0_18] : memref<8x512xf32, #tpu.memory_space<vmem>>, vector<8x128xf32>
    tpu.vector_store %arg7[%c0_17, %c0_18], %41 {strides = array<i32>} : memref<8x512xf32, #tpu.memory_space<vmem>>, vector<8x128xf32>,
    %c1 = arith.constant 1 : index
    %47 = memref.load %arg1[%c1] : memref<4xf32, #tpu.memory_space<smem>>
    %c1_19 = arith.constant 1 : index
    %48 = memref.load %arg2[%c1_19] : memref<4xf32, #tpu.memory_space<smem>>
    %c1_20 = arith.constant 1 : index
    %49 = memref.load %arg3[%c1_20] : memref<4xf32, #tpu.memory_space<smem>>
    %cst_21 = arith.constant dense<0.000000e+00> : vector<8x128xf32>
    %50 = tpu.matmul %45, %3, %cst_21 {dimension_numbers = #tpu.dot_dimension_numbers<[1], [0], [0], [1], [0, 0, 1, 1], [], []>} : vector<8x8xf32>, vector<8x128xf32>, vector<8x128xf32> -> vector<8x128xf32>
    %cst_22 = arith.constant dense<0.000000e+00> : vector<8x8xf32>
    %51 = tpu.matmul %41, %4, %cst_22 {dimension_numbers = #tpu.dot_dimension_numbers<[1], [0], [0], [1], [0, 0, 1, 1], [], []>} : vector<8x128xf32>, vector<128x8xf32>, vector<8x8xf32> -> vector<8x8xf32>
    %52 = vector.broadcast %48 : f32 to vector<8x128xf32>
    %53 = arith.mulf %52, %41 : vector<8x128xf32>
    %54 = arith.addf %2, %50 : vector<8x128xf32>
    %55 = vector.broadcast %47 : f32 to vector<8x128xf32>
    %56 = arith.mulf %55, %54 : vector<8x128xf32>
    %57 = arith.subf %53, %56 : vector<8x128xf32>
    %58 = vector.broadcast %47 : f32 to vector<8x8xf32>
    %59 = arith.mulf %58, %51 : vector<8x8xf32>
    %60 = arith.addf %45, %59 : vector<8x8xf32>
    %cst_23 = arith.constant 0.000000e+00 : f32
    %61 = vector.broadcast %cst_23 : f32 to vector<8x128xf32>
    %62 = arith.maximumf %57, %61 : vector<8x128xf32>
    %63 = arith.mulf %60, %60 : vector<8x8xf32>
    %64 = vector.broadcast %49 : f32 to vector<8x8xf32>
    %65 = arith.addf %63, %64 : vector<8x8xf32>
    %cst_24 = arith.constant 9.99999993E-9 : f32
    %66 = vector.broadcast %cst_24 : f32 to vector<8x8xf32>
    %67 = arith.maximumf %65, %66 : vector<8x8xf32>
    %68 = math.sqrt %67 : vector<8x8xf32>
    %69 = arith.subf %60, %68 : vector<8x8xf32>
    %cst_25 = arith.constant 5.000000e-01 : f32
    %70 = vector.broadcast %cst_25 : f32 to vector<8x8xf32>
    %71 = arith.mulf %70, %69 : vector<8x8xf32>
    %cst_26 = arith.constant dense<0.000000e+00> : vector<8x128xf32>
    %72 = tpu.matmul %71, %3, %cst_26 {dimension_numbers = #tpu.dot_dimension_numbers<[1], [0], [0], [1], [0, 0, 1, 1], [], []>} : vector<8x8xf32>, vector<8x128xf32>, vector<8x128xf32> -> vector<8x128xf32>
    %cst_27 = arith.constant dense<0.000000e+00> : vector<8x8xf32>
    %73 = tpu.matmul %62, %4, %cst_27 {dimension_numbers = #tpu.dot_dimension_numbers<[1], [0], [0], [1], [0, 0, 1, 1], [], []>} : vector<8x128xf32>, vector<128x8xf32>, vector<8x8xf32> -> vector<8x8xf32>
    %74 = arith.subf %62, %41 : vector<8x128xf32>
    %75 = vector.broadcast %48 : f32 to vector<8x128xf32>
    %76 = arith.mulf %75, %74 : vector<8x128xf32>
    %77 = arith.addf %41, %76 : vector<8x128xf32>
    %78 = arith.subf %50, %72 : vector<8x128xf32>
    %79 = vector.broadcast %47 : f32 to vector<8x128xf32>
    %80 = arith.mulf %79, %78 : vector<8x128xf32>
    %81 = arith.addf %77, %80 : vector<8x128xf32>
    %82 = arith.subf %73, %51 : vector<8x8xf32>
    %83 = vector.broadcast %47 : f32 to vector<8x8xf32>
    %84 = arith.mulf %83, %82 : vector<8x8xf32>
    %85 = arith.addf %71, %84 : vector<8x8xf32>
    %c0_28 = arith.constant 0 : index
    %c128 = arith.constant 128 : index
    %86 = vector.load %arg7[%c0_28, %c128] : memref<8x512xf32, #tpu.memory_space<vmem>>, vector<8x128xf32>
    tpu.vector_store %arg7[%c0_28, %c128], %81 {strides = array<i32>} : memref<8x512xf32, #tpu.memory_space<vmem>>, vector<8x128xf32>,
    %c2 = arith.constant 2 : index
    %87 = memref.load %arg1[%c2] : memref<4xf32, #tpu.memory_space<smem>>
    %c2_29 = arith.constant 2 : index
    %88 = memref.load %arg2[%c2_29] : memref<4xf32, #tpu.memory_space<smem>>
    %c2_30 = arith.constant 2 : index
    %89 = memref.load %arg3[%c2_30] : memref<4xf32, #tpu.memory_space<smem>>
    %cst_31 = arith.constant dense<0.000000e+00> : vector<8x128xf32>
    %90 = tpu.matmul %85, %3, %cst_31 {dimension_numbers = #tpu.dot_dimension_numbers<[1], [0], [0], [1], [0, 0, 1, 1], [], []>} : vector<8x8xf32>, vector<8x128xf32>, vector<8x128xf32> -> vector<8x128xf32>
    %cst_32 = arith.constant dense<0.000000e+00> : vector<8x8xf32>
    %91 = tpu.matmul %81, %4, %cst_32 {dimension_numbers = #tpu.dot_dimension_numbers<[1], [0], [0], [1], [0, 0, 1, 1], [], []>} : vector<8x128xf32>, vector<128x8xf32>, vector<8x8xf32> -> vector<8x8xf32>
    %92 = vector.broadcast %88 : f32 to vector<8x128xf32>
    %93 = arith.mulf %92, %81 : vector<8x128xf32>
    %94 = arith.addf %2, %90 : vector<8x128xf32>
    %95 = vector.broadcast %87 : f32 to vector<8x128xf32>
    %96 = arith.mulf %95, %94 : vector<8x128xf32>
    %97 = arith.subf %93, %96 : vector<8x128xf32>
    %98 = vector.broadcast %87 : f32 to vector<8x8xf32>
    %99 = arith.mulf %98, %91 : vector<8x8xf32>
    %100 = arith.addf %85, %99 : vector<8x8xf32>
    %cst_33 = arith.constant 0.000000e+00 : f32
    %101 = vector.broadcast %cst_33 : f32 to vector<8x128xf32>
    %102 = arith.maximumf %97, %101 : vector<8x128xf32>
    %103 = arith.mulf %100, %100 : vector<8x8xf32>
    %104 = vector.broadcast %89 : f32 to vector<8x8xf32>
    %105 = arith.addf %103, %104 : vector<8x8xf32>
    %cst_34 = arith.constant 9.99999993E-9 : f32
    %106 = vector.broadcast %cst_34 : f32 to vector<8x8xf32>
    %107 = arith.maximumf %105, %106 : vector<8x8xf32>
    %108 = math.sqrt %107 : vector<8x8xf32>
    %109 = arith.subf %100, %108 : vector<8x8xf32>
    %cst_35 = arith.constant 5.000000e-01 : f32
    %110 = vector.broadcast %cst_35 : f32 to vector<8x8xf32>
    %111 = arith.mulf %110, %109 : vector<8x8xf32>
    %cst_36 = arith.constant dense<0.000000e+00> : vector<8x128xf32>
    %112 = tpu.matmul %111, %3, %cst_36 {dimension_numbers = #tpu.dot_dimension_numbers<[1], [0], [0], [1], [0, 0, 1, 1], [], []>} : vector<8x8xf32>, vector<8x128xf32>, vector<8x128xf32> -> vector<8x128xf32>
    %cst_37 = arith.constant dense<0.000000e+00> : vector<8x8xf32>
    %113 = tpu.matmul %102, %4, %cst_37 {dimension_numbers = #tpu.dot_dimension_numbers<[1], [0], [0], [1], [0, 0, 1, 1], [], []>} : vector<8x128xf32>, vector<128x8xf32>, vector<8x8xf32> -> vector<8x8xf32>
    %114 = arith.subf %102, %81 : vector<8x128xf32>
    %115 = vector.broadcast %88 : f32 to vector<8x128xf32>
    %116 = arith.mulf %115, %114 : vector<8x128xf32>
    %117 = arith.addf %81, %116 : vector<8x128xf32>
    %118 = arith.subf %90, %112 : vector<8x128xf32>
    %119 = vector.broadcast %87 : f32 to vector<8x128xf32>
    %120 = arith.mulf %119, %118 : vector<8x128xf32>
    %121 = arith.addf %117, %120 : vector<8x128xf32>
    %122 = arith.subf %113, %91 : vector<8x8xf32>
    %123 = vector.broadcast %87 : f32 to vector<8x8xf32>
    %124 = arith.mulf %123, %122 : vector<8x8xf32>
    %125 = arith.addf %111, %124 : vector<8x8xf32>
    %c0_38 = arith.constant 0 : index
    %c256 = arith.constant 256 : index
    %126 = vector.load %arg7[%c0_38, %c256] : memref<8x512xf32, #tpu.memory_space<vmem>>, vector<8x128xf32>
    tpu.vector_store %arg7[%c0_38, %c256], %121 {strides = array<i32>} : memref<8x512xf32, #tpu.memory_space<vmem>>, vector<8x128xf32>,
    %c3 = arith.constant 3 : index
    %127 = memref.load %arg1[%c3] : memref<4xf32, #tpu.memory_space<smem>>
    %c3_39 = arith.constant 3 : index
    %128 = memref.load %arg2[%c3_39] : memref<4xf32, #tpu.memory_space<smem>>
    %c3_40 = arith.constant 3 : index
    %129 = memref.load %arg3[%c3_40] : memref<4xf32, #tpu.memory_space<smem>>
    %cst_41 = arith.constant dense<0.000000e+00> : vector<8x128xf32>
    %130 = tpu.matmul %125, %3, %cst_41 {dimension_numbers = #tpu.dot_dimension_numbers<[1], [0], [0], [1], [0, 0, 1, 1], [], []>} : vector<8x8xf32>, vector<8x128xf32>, vector<8x128xf32> -> vector<8x128xf32>
    %cst_42 = arith.constant dense<0.000000e+00> : vector<8x8xf32>
    %131 = tpu.matmul %121, %4, %cst_42 {dimension_numbers = #tpu.dot_dimension_numbers<[1], [0], [0], [1], [0, 0, 1, 1], [], []>} : vector<8x128xf32>, vector<128x8xf32>, vector<8x8xf32> -> vector<8x8xf32>
    %132 = vector.broadcast %128 : f32 to vector<8x128xf32>
    %133 = arith.mulf %132, %121 : vector<8x128xf32>
    %134 = arith.addf %2, %130 : vector<8x128xf32>
    %135 = vector.broadcast %127 : f32 to vector<8x128xf32>
    %136 = arith.mulf %135, %134 : vector<8x128xf32>
    %137 = arith.subf %133, %136 : vector<8x128xf32>
    %138 = vector.broadcast %127 : f32 to vector<8x8xf32>
    %139 = arith.mulf %138, %131 : vector<8x8xf32>
    %140 = arith.addf %125, %139 : vector<8x8xf32>
    %cst_43 = arith.constant 0.000000e+00 : f32
    %141 = vector.broadcast %cst_43 : f32 to vector<8x128xf32>
    %142 = arith.maximumf %137, %141 : vector<8x128xf32>
    %143 = arith.mulf %140, %140 : vector<8x8xf32>
    %144 = vector.broadcast %129 : f32 to vector<8x8xf32>
    %145 = arith.addf %143, %144 : vector<8x8xf32>
    %cst_44 = arith.constant 9.99999993E-9 : f32
    %146 = vector.broadcast %cst_44 : f32 to vector<8x8xf32>
    %147 = arith.maximumf %145, %146 : vector<8x8xf32>
    %148 = math.sqrt %147 : vector<8x8xf32>
    %149 = arith.subf %140, %148 : vector<8x8xf32>
    %cst_45 = arith.constant 5.000000e-01 : f32
    %150 = vector.broadcast %cst_45 : f32 to vector<8x8xf32>
    %151 = arith.mulf %150, %149 : vector<8x8xf32>
    %cst_46 = arith.constant dense<0.000000e+00> : vector<8x128xf32>
    %152 = tpu.matmul %151, %3, %cst_46 {dimension_numbers = #tpu.dot_dimension_numbers<[1], [0], [0], [1], [0, 0, 1, 1], [], []>} : vector<8x8xf32>, vector<8x128xf32>, vector<8x128xf32> -> vector<8x128xf32>
    %153 = arith.subf %142, %121 : vector<8x128xf32>
    %154 = vector.broadcast %128 : f32 to vector<8x128xf32>
    %155 = arith.mulf %154, %153 : vector<8x128xf32>
    %156 = arith.addf %121, %155 : vector<8x128xf32>
    %157 = arith.subf %130, %152 : vector<8x128xf32>
    %158 = vector.broadcast %127 : f32 to vector<8x128xf32>
    %159 = arith.mulf %158, %157 : vector<8x128xf32>
    %160 = arith.addf %156, %159 : vector<8x128xf32>
    %c0_47 = arith.constant 0 : index
    %c384 = arith.constant 384 : index
    %161 = vector.load %arg7[%c0_47, %c384] : memref<8x512xf32, #tpu.memory_space<vmem>>, vector<8x128xf32>
    tpu.vector_store %arg7[%c0_47, %c384], %160 {strides = array<i32>} : memref<8x512xf32, #tpu.memory_space<vmem>>, vector<8x128xf32>,
    return
  }
  func.func @transform_0(%arg0: i32, %arg1: memref<4xf32, #tpu.memory_space<smem>>, %arg2: memref<4xf32, #tpu.memory_space<smem>>, %arg3: memref<4xf32, #tpu.memory_space<smem>>) -> (i32, i32) {
    %c0_i32 = arith.constant 0 : i32
    %c0_i32_0 = arith.constant 0 : i32
    return %arg0, %c0_i32 : i32, i32
  }
  func.func @transform_1(%arg0: i32, %arg1: memref<4xf32, #tpu.memory_space<smem>>, %arg2: memref<4xf32, #tpu.memory_space<smem>>, %arg3: memref<4xf32, #tpu.memory_space<smem>>) -> (i32, i32) {
    %c0_i32 = arith.constant 0 : i32
    %c0_i32_0 = arith.constant 0 : i32
    %c0_i32_1 = arith.constant 0 : i32
    return %c0_i32, %c0_i32_0 : i32, i32
  }
  func.func @transform_2(%arg0: i32, %arg1: memref<4xf32, #tpu.memory_space<smem>>, %arg2: memref<4xf32, #tpu.memory_space<smem>>, %arg3: memref<4xf32, #tpu.memory_space<smem>>) -> (i32, i32) {
    %c0_i32 = arith.constant 0 : i32
    %c0_i32_0 = arith.constant 0 : i32
    %c0_i32_1 = arith.constant 0 : i32
    return %c0_i32, %c0_i32_0 : i32, i32
  }
  func.func @transform_3(%arg0: i32, %arg1: memref<4xf32, #tpu.memory_space<smem>>, %arg2: memref<4xf32, #tpu.memory_space<smem>>, %arg3: memref<4xf32, #tpu.memory_space<smem>>) -> (i32, i32) {
    %c0_i32 = arith.constant 0 : i32
    %c0_i32_0 = arith.constant 0 : i32
    return %arg0, %c0_i32 : i32, i32
  }
}

</mosaic_0001>

<llo_original>
// kernel: tpu_custom_call.1
$region0: #{tpu_custom_call.1}
  #allocation0 [shape = 'u32[]', space=smem, size = 0x4, offset = 0x4, fixed_abs, tag = 'smem constant byte address 0x4 - core index']
  #allocation1 [shape = 'u32[72,128]{1,0:T(1,128)}', space=vmem, size = 0x9000, scoped, tag = 'internal scratch']
  #allocation2 [shape = 's32[1]{0}', space=sflag, size = 0x4, scoped, tag = 'scoped memory for tpu_custom_call.1']
  #allocation3 [shape = 'u8[512]{0}', space=smem, size = 0x200, scoped, tag = 'prefetched SMEM operand 0']
  #allocation4 [shape = 'u8[512]{0}', space=smem, size = 0x200, scoped, tag = 'prefetched SMEM operand 1']
  #allocation5 [shape = 'u8[512]{0}', space=smem, size = 0x200, scoped, tag = 'prefetched SMEM operand 2']
  %s0 = inlined_call_operand.vmem [shape: f32[4], index: 0, kind: input, shape index: {}]
  %s1 = inlined_call_operand.vmem [shape: f32[4], index: 1, kind: input, shape index: {}]
  %s2 = inlined_call_operand.vmem [shape: f32[4], index: 2, kind: input, shape index: {}]
  %s3 = inlined_call_operand.vmem [shape: f32[8,128], index: 3, kind: input, shape index: {}]
  %s4 = inlined_call_operand.vmem [shape: f32[8,128], index: 4, kind: input, shape index: {}]
  %s5 = inlined_call_operand.vmem [shape: f32[128,8], index: 5, kind: input, shape index: {}]
  %s6 = inlined_call_operand.hbm [shape: f32[8,512], index: 6, kind: output, shape index: {}]
  %s7 = sld [smem:[#allocation0]]
  $region22: #{tpu_custom_call.1} parent=0
    _
  %s9 = ssub.s32 1, %s7
  %s10 = scalar_select 0, %s9, %s7
  %s12 = sshll.u32 %s0, 4
  %s13 = int_to_ptr.vmem [resolvable:$true] %s12
  %15 = dma.vmem_to_smem %s13, 16, [#allocation3], [#allocation2]
  %s17 = sshll.u32 %s1, 4
  %s18 = int_to_ptr.vmem [resolvable:$true] %s17
  %20 = dma.vmem_to_smem %s18, 16, [#allocation4], [#allocation2]
  %s22 = sshll.u32 %s2, 4
  %s23 = int_to_ptr.vmem [resolvable:$true] %s22
  %25 = dma.vmem_to_smem %s23, 16, [#allocation5], [#allocation2]
  %27 = dma.done [#allocation2], 48
  %28 = sfence
  $region1: #{tpu_custom_call.1} parent=0
    #allocation6 [shape = 'u8[16384]{0}', space=vmem, size = 0x4000, scoped, tag = 'output window, operand 0, single buffered']
    #allocation7 [shape = 's32[1]{0}', space=sflag, size = 0x4, scoped, tag = 'scoped memory for tpu_custom_call.1']
    %29 = vsyncpa [#allocation7], 0
    // Predicated region
    $region2: #{tpu_custom_call.1} parent=1 // pred_check
      _
    $region3: #{tpu_custom_call.1} parent=1 // pred_check_branch
      %31 = sbr.rel (0) target = $region5
    $region4: #{tpu_custom_call.1} parent=1 // pred_region
      _
    $region5: #{tpu_custom_call.1} parent=1 // pred_fallthru
      _
    // Predicated region
    $region6: #{tpu_custom_call.1} parent=1 // pred_check
      _
    $region7: #{tpu_custom_call.1} parent=1 // pred_check_branch
      %33 = sbr.rel (0) target = $region9
    $region8: #{tpu_custom_call.1} parent=1 // pred_region
      _
    $region9: #{tpu_custom_call.1} parent=1 // pred_fallthru
      _
    // Predicated region
    $region10: #{tpu_custom_call.1} parent=1 // pred_check
      _
    $region11: #{tpu_custom_call.1} parent=1 // pred_check_branch
      %35 = sbr.rel (0) target = $region13
    $region12: #{tpu_custom_call.1} parent=1 // pred_region
      _
    $region13: #{tpu_custom_call.1} parent=1 // pred_fallthru
      _
    %v36 = vld [vmem:[%s3] sm:$0xff]
    %v37 = vmul.f32 %v36, 2.0
    %v38 = vld [vmem:[%s4] sm:$0xff]
    %v39 = vld [vmem:[%s5] sm:$0xff]
    %v40 = vld [vmem:[%s5 + $0x8] sm:$0xff]
    %v41 = vld [vmem:[%s5 + $0x10] sm:$0xff]
    %v42 = vld [vmem:[%s5 + $0x18] sm:$0xff]
    %v43 = vld [vmem:[%s5 + $0x20] sm:$0xff]
    %v44 = vld [vmem:[%s5 + $0x28] sm:$0xff]
    %v45 = vld [vmem:[%s5 + $0x30] sm:$0xff]
    %v46 = vld [vmem:[%s5 + $0x38] sm:$0xff]
    %v47 = vld [vmem:[%s5 + $0x40] sm:$0xff]
    %v48 = vld [vmem:[%s5 + $0x48] sm:$0xff]
    %v49 = vld [vmem:[%s5 + $0x50] sm:$0xff]
    %v50 = vld [vmem:[%s5 + $0x58] sm:$0xff]
    %v51 = vld [vmem:[%s5 + $0x60] sm:$0xff]
    %v52 = vld [vmem:[%s5 + $0x68] sm:$0xff]
    %v53 = vld [vmem:[%s5 + $0x70] sm:$0xff]
    %v54 = vld [vmem:[%s5 + $0x78] sm:$0xff]
    %s55 = sld [smem:[#allocation3]]
    %s56 = sld [smem:[#allocation4]]
    %s57 = sld [smem:[#allocation5]]
    %vm58 = vcmask 64512
    %v60 = vsel %vm58, 0.0, 0
    %62 = vmatpush.msra.mxu0 0.0
    %63 = vmatpush.msra.mxu0 0.0
    %64 = vmatpush.msra.mxu0 0.0
    %65 = vmatpush.msra.mxu0 0.0
    %66 = vmatpush.msra.mxu0 0.0
    %67 = vmatpush.msra.mxu0 0.0
    %68 = vmatpush.msra.mxu0 0.0
    %69 = vmatpush.msra.mxu0 0.0
    %70 = vmatpush.msra.mxu0 0.0
    %71 = vmatpush.msra.mxu0 0.0
    %72 = vmatpush.msra.mxu0 0.0
    %73 = vmatpush.msra.mxu0 0.0
    %74 = vmatpush.msra.mxu0 0.0
    %75 = vmatpush.msra.mxu0 0.0
    %76 = vmatpush.msra.mxu0 0.0
    %77 = vmatpush.msra.mxu0 %v38
    %78 = vmatmul.f32.gmra.mxu0 %v60
    %v79 = vpop.f32.mrf.mxu0
    %v80 = vadd.f32 0.0, %v79
    %81 = vdwg.mxu0
    %82 = vmatpush.msra.mxu0 %v54
    %83 = vmatpush.msra.mxu0 %v53
    %84 = vmatpush.msra.mxu0 %v52
    %85 = vmatpush.msra.mxu0 %v51
    %86 = vmatpush.msra.mxu0 %v50
    %87 = vmatpush.msra.mxu0 %v49
    %88 = vmatpush.msra.mxu0 %v48
    %89 = vmatpush.msra.mxu0 %v47
    %90 = vmatpush.msra.mxu0 %v46
    %91 = vmatpush.msra.mxu0 %v45
    %92 = vmatpush.msra.mxu0 %v44
    %93 = vmatpush.msra.mxu0 %v43
    %94 = vmatpush.msra.mxu0 %v42
    %95 = vmatpush.msra.mxu0 %v41
    %96 = vmatpush.msra.mxu0 %v40
    %97 = vmatpush.msra.mxu0 %v39
    %98 = vmatmul.f32.gmra.mxu0 0.0
    %v99 = vpop.f32.mrf.mxu0
    %v100 = vadd.f32 0.0, %v99
    %101 = vdwg.mxu0
    %v102 = vstv %s56
    %v103 = vmul.f32 %v102, 0.0
    %v104 = vadd.f32 %v37, %v80
    %v105 = vstv %s55
    %v106 = vmul.f32 %v105, %v104
    %v107 = vsub.f32 %v103, %v106
    %v108 = vmul.f32 %v105, %v100
    %v109 = vadd.f32 %v108, 0.0
    %v110 = vmax.f32 %v107, 0.0
    %v111 = vmul.f32 %v109, %v109
    %v112 = vstv %s57
    %v113 = vadd.f32 %v111, %v112
    %v114 = vmax.f32 %v113, 1e-08
    %v115 = vrsqrt.pop %v114
    %v116 = vmul.f32 %v115, %v114
    %v117 = vmul.f32 %v116, %v115
    %v118 = vmul.f32 0.5, %v117
    %v119 = vsub.f32 1.5, %v118
    %v120 = vmul.f32 %v115, %v119
    %v121 = vmul.f32 %v114, %v120
    %vm122 = vcmp.eq.f32.partialorder %v114, inf
    %v123 = vsel %vm122, %v114, %v121
    %vm124 = vcmp.eq.f32.partialorder %v114, 0.0
    %v125 = vand.u32 %v114, 2147483648
    %v126 = vsel %vm124, %v125, %v123
    %v127 = vsub.f32 %v109, %v126
    %v128 = vmul.f32 %v127, 0.5
    %v130 = vsel %vm58, %v128, 0
    %132 = vmatpush.msra.mxu0 0.0
    %133 = vmatpush.msra.mxu0 0.0
    %134 = vmatpush.msra.mxu0 0.0
    %135 = vmatpush.msra.mxu0 0.0
    %136 = vmatpush.msra.mxu0 0.0
    %137 = vmatpush.msra.mxu0 0.0
    %138 = vmatpush.msra.mxu0 0.0
    %139 = vmatpush.msra.mxu0 0.0
    %140 = vmatpush.msra.mxu0 0.0
    %141 = vmatpush.msra.mxu0 0.0
    %142 = vmatpush.msra.mxu0 0.0
    %143 = vmatpush.msra.mxu0 0.0
    %144 = vmatpush.msra.mxu0 0.0
    %145 = vmatpush.msra.mxu0 0.0
    %146 = vmatpush.msra.mxu0 0.0
    %147 = vmatpush.msra.mxu0 %v38
    %148 = vmatmul.f32.gmra.mxu0 %v130
    %v149 = vpop.f32.mrf.mxu0
    %v150 = vadd.f32 0.0, %v149
    %151 = vdwg.mxu0
    %152 = vmatpush.msra.mxu0 %v54
    %153 = vmatpush.msra.mxu0 %v53
    %154 = vmatpush.msra.mxu0 %v52
    %155 = vmatpush.msra.mxu0 %v51
    %156 = vmatpush.msra.mxu0 %v50
    %157 = vmatpush.msra.mxu0 %v49
    %158 = vmatpush.msra.mxu0 %v48
    %159 = vmatpush.msra.mxu0 %v47
    %160 = vmatpush.msra.mxu0 %v46
    %161 = vmatpush.msra.mxu0 %v45
    %162 = vmatpush.msra.mxu0 %v44
    %163 = vmatpush.msra.mxu0 %v43
    %164 = vmatpush.msra.mxu0 %v42
    %165 = vmatpush.msra.mxu0 %v41
    %166 = vmatpush.msra.mxu0 %v40
    %167 = vmatpush.msra.mxu0 %v39
    %168 = vmatmul.f32.gmra.mxu0 %v110
    %v169 = vpop.f32.mrf.mxu0
    %v170 = vadd.f32 0.0, %v169
    %171 = vdwg.mxu0
    %v172 = vmul.f32 %v102, %v110
    %v173 = vadd.f32 %v172, 0.0
    %v174 = vsub.f32 %v80, %v150
    %v175 = vmul.f32 %v105, %v174
    %v176 = vadd.f32 %v173, %v175
    %v177 = vsub.f32 %v170, %v100
    %v178 = vmul.f32 %v105, %v177
    %v179 = vadd.f32 %v128, %v178
    %180 = vst [vmem:[#allocation6] sm:$0xff] %v176
    %s181 = sld [smem:[#allocation3 + $0x1]]
    %s182 = sld [smem:[#allocation4 + $0x1]]
    %s183 = sld [smem:[#allocation5 + $0x1]]
    %v185 = vsel %vm58, %v179, 0
    %187 = vmatpush.msra.mxu0 0.0
    %188 = vmatpush.msra.mxu0 0.0
    %189 = vmatpush.msra.mxu0 0.0
    %190 = vmatpush.msra.mxu0 0.0
    %191 = vmatpush.msra.mxu0 0.0
    %192 = vmatpush.msra.mxu0 0.0
    %193 = vmatpush.msra.mxu0 0.0
    %194 = vmatpush.msra.mxu0 0.0
    %195 = vmatpush.msra.mxu0 0.0
    %196 = vmatpush.msra.mxu0 0.0
    %197 = vmatpush.msra.mxu0 0.0
    %198 = vmatpush.msra.mxu0 0.0
    %199 = vmatpush.msra.mxu0 0.0
    %200 = vmatpush.msra.mxu0 0.0
    %201 = vmatpush.msra.mxu0 0.0
    %202 = vmatpush.msra.mxu0 %v38
    %203 = vmatmul.f32.gmra.mxu0 %v185
    %v204 = vpop.f32.mrf.mxu0
    %v205 = vadd.f32 0.0, %v204
    %206 = vdwg.mxu0
    %207 = vmatpush.msra.mxu0 %v54
    %208 = vmatpush.msra.mxu0 %v53
    %209 = vmatpush.msra.mxu0 %v52
    %210 = vmatpush.msra.mxu0 %v51
    %211 = vmatpush.msra.mxu0 %v50
    %212 = vmatpush.msra.mxu0 %v49
    %213 = vmatpush.msra.mxu0 %v48
    %214 = vmatpush.msra.mxu0 %v47
    %215 = vmatpush.msra.mxu0 %v46
    %216 = vmatpush.msra.mxu0 %v45
    %217 = vmatpush.msra.mxu0 %v44
    %218 = vmatpush.msra.mxu0 %v43
    %219 = vmatpush.msra.mxu0 %v42
    %220 = vmatpush.msra.mxu0 %v41
    %221 = vmatpush.msra.mxu0 %v40
    %222 = vmatpush.msra.mxu0 %v39
    %223 = vmatmul.f32.gmra.mxu0 %v176
    %v224 = vpop.f32.mrf.mxu0
    %v225 = vadd.f32 0.0, %v224
    %226 = vdwg.mxu0
    %v227 = vstv %s182
    %v228 = vmul.f32 %v227, %v176
    %v229 = vadd.f32 %v37, %v205
    %v230 = vstv %s181
    %v231 = vmul.f32 %v230, %v229
    %v232 = vsub.f32 %v228, %v231
    %v233 = vmul.f32 %v230, %v225
    %v234 = vadd.f32 %v179, %v233
    %v235 = vmax.f32 %v232, 0.0
    %v236 = vmul.f32 %v234, %v234
    %v237 = vstv %s183
    %v238 = vadd.f32 %v236, %v237
    %v239 = vmax.f32 %v238, 1e-08
    %v240 = vrsqrt.pop %v239
    %v241 = vmul.f32 %v240, %v239
    %v242 = vmul.f32 %v241, %v240
    %v243 = vmul.f32 0.5, %v242
    %v244 = vsub.f32 1.5, %v243
    %v245 = vmul.f32 %v240, %v244
    %v246 = vmul.f32 %v239, %v245
    %vm247 = vcmp.eq.f32.partialorder %v239, inf
    %v248 = vsel %vm247, %v239, %v246
    %vm249 = vcmp.eq.f32.partialorder %v239, 0.0
    %v250 = vand.u32 %v239, 2147483648
    %v251 = vsel %vm249, %v250, %v248
    %v252 = vsub.f32 %v234, %v251
    %v253 = vmul.f32 %v252, 0.5
    %v255 = vsel %vm58, %v253, 0
    %257 = vmatpush.msra.mxu0 0.0
    %258 = vmatpush.msra.mxu0 0.0
    %259 = vmatpush.msra.mxu0 0.0
    %260 = vmatpush.msra.mxu0 0.0
    %261 = vmatpush.msra.mxu0 0.0
    %262 = vmatpush.msra.mxu0 0.0
    %263 = vmatpush.msra.mxu0 0.0
    %264 = vmatpush.msra.mxu0 0.0
    %265 = vmatpush.msra.mxu0 0.0
    %266 = vmatpush.msra.mxu0 0.0
    %267 = vmatpush.msra.mxu0 0.0
    %268 = vmatpush.msra.mxu0 0.0
    %269 = vmatpush.msra.mxu0 0.0
    %270 = vmatpush.msra.mxu0 0.0
    %271 = vmatpush.msra.mxu0 0.0
    %272 = vmatpush.msra.mxu0 %v38
    %273 = vmatmul.f32.gmra.mxu0 %v255
    %v274 = vpop.f32.mrf.mxu0
    %v275 = vadd.f32 0.0, %v274
    %276 = vdwg.mxu0
    %277 = vmatpush.msra.mxu0 %v54
    %278 = vmatpush.msra.mxu0 %v53
    %279 = vmatpush.msra.mxu0 %v52
    %280 = vmatpush.msra.mxu0 %v51
    %281 = vmatpush.msra.mxu0 %v50
    %282 = vmatpush.msra.mxu0 %v49
    %283 = vmatpush.msra.mxu0 %v48
    %284 = vmatpush.msra.mxu0 %v47
    %285 = vmatpush.msra.mxu0 %v46
    %286 = vmatpush.msra.mxu0 %v45
    %287 = vmatpush.msra.mxu0 %v44
    %288 = vmatpush.msra.mxu0 %v43
    %289 = vmatpush.msra.mxu0 %v42
    %290 = vmatpush.msra.mxu0 %v41
    %291 = vmatpush.msra.mxu0 %v40
    %292 = vmatpush.msra.mxu0 %v39
    %293 = vmatmul.f32.gmra.mxu0 %v235
    %v294 = vpop.f32.mrf.mxu0
    %v295 = vadd.f32 0.0, %v294
    %296 = vdwg.mxu0
    %v297 = vsub.f32 %v235, %v176
    %v298 = vmul.f32 %v227, %v297
    %v299 = vadd.f32 %v176, %v298
    %v300 = vsub.f32 %v205, %v275
    %v301 = vmul.f32 %v230, %v300
    %v302 = vadd.f32 %v299, %v301
    %v303 = vsub.f32 %v295, %v225
    %v304 = vmul.f32 %v230, %v303
    %v305 = vadd.f32 %v253, %v304
    %306 = vst [vmem:[#allocation6 + $0x8] sm:$0xff] %v302
    %s307 = sld [smem:[#allocation3 + $0x2]]
    %s308 = sld [smem:[#allocation4 + $0x2]]
    %s309 = sld [smem:[#allocation5 + $0x2]]
    %v311 = vsel %vm58, %v305, 0
    %313 = vmatpush.msra.mxu0 0.0
    %314 = vmatpush.msra.mxu0 0.0
    %315 = vmatpush.msra.mxu0 0.0
    %316 = vmatpush.msra.mxu0 0.0
    %317 = vmatpush.msra.mxu0 0.0
    %318 = vmatpush.msra.mxu0 0.0
    %319 = vmatpush.msra.mxu0 0.0
    %320 = vmatpush.msra.mxu0 0.0
    %321 = vmatpush.msra.mxu0 0.0
    %322 = vmatpush.msra.mxu0 0.0
    %323 = vmatpush.msra.mxu0 0.0
    %324 = vmatpush.msra.mxu0 0.0
    %325 = vmatpush.msra.mxu0 0.0
    %326 = vmatpush.msra.mxu0 0.0
    %327 = vmatpush.msra.mxu0 0.0
    %328 = vmatpush.msra.mxu0 %v38
    %329 = vmatmul.f32.gmra.mxu0 %v311
    %v330 = vpop.f32.mrf.mxu0
    %v331 = vadd.f32 0.0, %v330
    %332 = vdwg.mxu0
    %333 = vmatpush.msra.mxu0 %v54
    %334 = vmatpush.msra.mxu0 %v53
    %335 = vmatpush.msra.mxu0 %v52
    %336 = vmatpush.msra.mxu0 %v51
    %337 = vmatpush.msra.mxu0 %v50
    %338 = vmatpush.msra.mxu0 %v49
    %339 = vmatpush.msra.mxu0 %v48
    %340 = vmatpush.msra.mxu0 %v47
    %341 = vmatpush.msra.mxu0 %v46
    %342 = vmatpush.msra.mxu0 %v45
    %343 = vmatpush.msra.mxu0 %v44
    %344 = vmatpush.msra.mxu0 %v43
    %345 = vmatpush.msra.mxu0 %v42
    %346 = vmatpush.msra.mxu0 %v41
    %347 = vmatpush.msra.mxu0 %v40
    %348 = vmatpush.msra.mxu0 %v39
    %349 = vmatmul.f32.gmra.mxu0 %v302
    %v350 = vpop.f32.mrf.mxu0
    %v351 = vadd.f32 0.0, %v350
    %352 = vdwg.mxu0
    %v353 = vstv %s308
    %v354 = vmul.f32 %v353, %v302
    %v355 = vadd.f32 %v37, %v331
    %v356 = vstv %s307
    %v357 = vmul.f32 %v356, %v355
    %v358 = vsub.f32 %v354, %v357
    %v359 = vmul.f32 %v356, %v351
    %v360 = vadd.f32 %v305, %v359
    %v361 = vmax.f32 %v358, 0.0
    %v362 = vmul.f32 %v360, %v360
    %v363 = vstv %s309
    %v364 = vadd.f32 %v362, %v363
    %v365 = vmax.f32 %v364, 1e-08
    %v366 = vrsqrt.pop %v365
    %v367 = vmul.f32 %v366, %v365
    %v368 = vmul.f32 %v367, %v366
    %v369 = vmul.f32 0.5, %v368
    %v370 = vsub.f32 1.5, %v369
    %v371 = vmul.f32 %v366, %v370
    %v372 = vmul.f32 %v365, %v371
    %vm373 = vcmp.eq.f32.partialorder %v365, inf
    %v374 = vsel %vm373, %v365, %v372
    %vm375 = vcmp.eq.f32.partialorder %v365, 0.0
    %v376 = vand.u32 %v365, 2147483648
    %v377 = vsel %vm375, %v376, %v374
    %v378 = vsub.f32 %v360, %v377
    %v379 = vmul.f32 %v378, 0.5
    %v381 = vsel %vm58, %v379, 0
    %383 = vmatpush.msra.mxu0 0.0
    %384 = vmatpush.msra.mxu0 0.0
    %385 = vmatpush.msra.mxu0 0.0
    %386 = vmatpush.msra.mxu0 0.0
    %387 = vmatpush.msra.mxu0 0.0
    %388 = vmatpush.msra.mxu0 0.0
    %389 = vmatpush.msra.mxu0 0.0
    %390 = vmatpush.msra.mxu0 0.0
    %391 = vmatpush.msra.mxu0 0.0
    %392 = vmatpush.msra.mxu0 0.0
    %393 = vmatpush.msra.mxu0 0.0
    %394 = vmatpush.msra.mxu0 0.0
    %395 = vmatpush.msra.mxu0 0.0
    %396 = vmatpush.msra.mxu0 0.0
    %397 = vmatpush.msra.mxu0 0.0
    %398 = vmatpush.msra.mxu0 %v38
    %399 = vmatmul.f32.gmra.mxu0 %v381
    %v400 = vpop.f32.mrf.mxu0
    %v401 = vadd.f32 0.0, %v400
    %402 = vdwg.mxu0
    %403 = vmatpush.msra.mxu0 %v54
    %404 = vmatpush.msra.mxu0 %v53
    %405 = vmatpush.msra.mxu0 %v52
    %406 = vmatpush.msra.mxu0 %v51
    %407 = vmatpush.msra.mxu0 %v50
    %408 = vmatpush.msra.mxu0 %v49
    %409 = vmatpush.msra.mxu0 %v48
    %410 = vmatpush.msra.mxu0 %v47
    %411 = vmatpush.msra.mxu0 %v46
    %412 = vmatpush.msra.mxu0 %v45
    %413 = vmatpush.msra.mxu0 %v44
    %414 = vmatpush.msra.mxu0 %v43
    %415 = vmatpush.msra.mxu0 %v42
    %416 = vmatpush.msra.mxu0 %v41
    %417 = vmatpush.msra.mxu0 %v40
    %418 = vmatpush.msra.mxu0 %v39
    %419 = vmatmul.f32.gmra.mxu0 %v361
    %v420 = vpop.f32.mrf.mxu0
    %v421 = vadd.f32 0.0, %v420
    %422 = vdwg.mxu0
    %v423 = vsub.f32 %v361, %v302
    %v424 = vmul.f32 %v353, %v423
    %v425 = vadd.f32 %v302, %v424
    %v426 = vsub.f32 %v331, %v401
    %v427 = vmul.f32 %v356, %v426
    %v428 = vadd.f32 %v425, %v427
    %v429 = vsub.f32 %v421, %v351
    %v430 = vmul.f32 %v356, %v429
    %v431 = vadd.f32 %v379, %v430
    %432 = vst [vmem:[#allocation6 + $0x10] sm:$0xff] %v428
    %s433 = sld [smem:[#allocation3 + $0x3]]
    %s434 = sld [smem:[#allocation4 + $0x3]]
    %s435 = sld [smem:[#allocation5 + $0x3]]
    %v437 = vsel %vm58, %v431, 0
    %439 = vmatpush.msra.mxu0 0.0
    %440 = vmatpush.msra.mxu0 0.0
    %441 = vmatpush.msra.mxu0 0.0
    %442 = vmatpush.msra.mxu0 0.0
    %443 = vmatpush.msra.mxu0 0.0
    %444 = vmatpush.msra.mxu0 0.0
    %445 = vmatpush.msra.mxu0 0.0
    %446 = vmatpush.msra.mxu0 0.0
    %447 = vmatpush.msra.mxu0 0.0
    %448 = vmatpush.msra.mxu0 0.0
    %449 = vmatpush.msra.mxu0 0.0
    %450 = vmatpush.msra.mxu0 0.0
    %451 = vmatpush.msra.mxu0 0.0
    %452 = vmatpush.msra.mxu0 0.0
    %453 = vmatpush.msra.mxu0 0.0
    %454 = vmatpush.msra.mxu0 %v38
    %455 = vmatmul.f32.gmra.mxu0 %v437
    %v456 = vpop.f32.mrf.mxu0
    %v457 = vadd.f32 0.0, %v456
    %458 = vdwg.mxu0
    %459 = vmatpush.msra.mxu0 %v54
    %460 = vmatpush.msra.mxu0 %v53
    %461 = vmatpush.msra.mxu0 %v52
    %462 = vmatpush.msra.mxu0 %v51
    %463 = vmatpush.msra.mxu0 %v50
    %464 = vmatpush.msra.mxu0 %v49
    %465 = vmatpush.msra.mxu0 %v48
    %466 = vmatpush.msra.mxu0 %v47
    %467 = vmatpush.msra.mxu0 %v46
    %468 = vmatpush.msra.mxu0 %v45
    %469 = vmatpush.msra.mxu0 %v44
    %470 = vmatpush.msra.mxu0 %v43
    %471 = vmatpush.msra.mxu0 %v42
    %472 = vmatpush.msra.mxu0 %v41
    %473 = vmatpush.msra.mxu0 %v40
    %474 = vmatpush.msra.mxu0 %v39
    %475 = vmatmul.f32.gmra.mxu0 %v428
    %v476 = vpop.f32.mrf.mxu0
    %v477 = vadd.f32 0.0, %v476
    %478 = vdwg.mxu0
    %v479 = vstv %s434
    %v480 = vmul.f32 %v479, %v428
    %v481 = vadd.f32 %v37, %v457
    %v482 = vstv %s433
    %v483 = vmul.f32 %v482, %v481
    %v484 = vsub.f32 %v480, %v483
    %v485 = vmul.f32 %v482, %v477
    %v486 = vadd.f32 %v431, %v485
    %v487 = vmax.f32 %v484, 0.0
    %v488 = vmul.f32 %v486, %v486
    %v489 = vstv %s435
    %v490 = vadd.f32 %v488, %v489
    %v491 = vmax.f32 %v490, 1e-08
    %v492 = vrsqrt.pop %v491
    %v493 = vmul.f32 %v492, %v491
    %v494 = vmul.f32 %v493, %v492
    %v495 = vmul.f32 0.5, %v494
    %v496 = vsub.f32 1.5, %v495
    %v497 = vmul.f32 %v492, %v496
    %v498 = vmul.f32 %v491, %v497
    %vm499 = vcmp.eq.f32.partialorder %v491, inf
    %v500 = vsel %vm499, %v491, %v498
    %vm501 = vcmp.eq.f32.partialorder %v491, 0.0
    %v502 = vand.u32 %v491, 2147483648
    %v503 = vsel %vm501, %v502, %v500
    %v504 = vsub.f32 %v486, %v503
    %v505 = vmul.f32 %v504, 0.5
    %v507 = vsel %vm58, %v505, 0
    %509 = vmatpush.msra.mxu0 0.0
    %510 = vmatpush.msra.mxu0 0.0
    %511 = vmatpush.msra.mxu0 0.0
    %512 = vmatpush.msra.mxu0 0.0
    %513 = vmatpush.msra.mxu0 0.0
    %514 = vmatpush.msra.mxu0 0.0
    %515 = vmatpush.msra.mxu0 0.0
    %516 = vmatpush.msra.mxu0 0.0
    %517 = vmatpush.msra.mxu0 0.0
    %518 = vmatpush.msra.mxu0 0.0
    %519 = vmatpush.msra.mxu0 0.0
    %520 = vmatpush.msra.mxu0 0.0
    %521 = vmatpush.msra.mxu0 0.0
    %522 = vmatpush.msra.mxu0 0.0
    %523 = vmatpush.msra.mxu0 0.0
    %524 = vmatpush.msra.mxu0 %v38
    %525 = vmatmul.f32.gmra.mxu0 %v507
    %v526 = vpop.f32.mrf.mxu0
    %v527 = vadd.f32 0.0, %v526
    %528 = vdwg.mxu0
    %v529 = vsub.f32 %v487, %v428
    %v530 = vmul.f32 %v479, %v529
    %v531 = vadd.f32 %v428, %v530
    %v532 = vsub.f32 %v457, %v527
    %v533 = vmul.f32 %v482, %v532
    %v534 = vadd.f32 %v531, %v533
    %535 = vst [vmem:[#allocation6 + $0x18] sm:$0xff] %v534
    // Predicated region
    $region14: #{tpu_custom_call.1} parent=1 // pred_check
      _
    $region15: #{tpu_custom_call.1} parent=1 // pred_check_branch
      %537 = sbr.rel (0) target = $region17
    $region16: #{tpu_custom_call.1} parent=1 // pred_region
      %539 = vsyncadd [#allocation7], 0
      %s541 = sshll.u32 [#allocation6], 4
      %s542 = int_to_ptr.vmem [resolvable:$true] %s541
      %s543 = sshll.u32 %s6, 4
      %s544 = int_to_ptr.hbm [resolvable:$true] %s543
      %546 = dma.vmem_to_hbm [thread:$0]  %s542, 512, %s544, [#allocation7]
    $region17: #{tpu_custom_call.1} parent=1 // pred_fallthru
      _
    // Predicated region
    $region18: #{tpu_custom_call.1} parent=1 // pred_check
      _
    $region19: #{tpu_custom_call.1} parent=1 // pred_check_branch
      %548 = sbr.rel (0) target = $region21
    $region20: #{tpu_custom_call.1} parent=1 // pred_region
      %550 = dma.done [#allocation7], 512
    $region21: #{tpu_custom_call.1} parent=1 // pred_fallthru
      _
    %551 = vsyncpa [#allocation7], 1

</llo_original>
